<compile_context>
chip_gen: v7x
topology: tpu7x:2x2x1
jax: 0.10.0
libtpu: 0.0.40
codegen_flags: <defaults>
</compile_context>

<pallas_src>
import functools

import jax
import jax.numpy as jnp
from jax.experimental import pallas as pl
from jax.experimental.pallas import tpu as pltpu

IN_FEATURES = 12
HIDDEN = 8
OUT_FEATURES = 5


def _linear_softmax_kernel(xt_ref, wt_ref, bt_ref, ot_ref):
    # xt: (12, tb)   wt: (5, 12)   bt: (5, 1)   ot: (5, tb)
    # Batch lives on the lane axis (tb, multiple of 128) -> dense loads/stores.
    x = xt_ref[...].astype(jnp.float32)

    # Folded fc1+fc2 in transposed form: (5, 12) @ (12, tb) -> (5, tb).
    z = jnp.dot(wt_ref[...], x, preferred_element_type=jnp.float32)
    z = z + bt_ref[...]                               # (5, 1) broadcast over lanes

    # Per-sample softmax: reduce over the 5 classes, i.e. the sublane axis.
    z = z - jnp.max(z, axis=0, keepdims=True)
    e = jnp.exp(z)
    denom = jnp.sum(e, axis=0, keepdims=True)
    # Exact divide on purpose (mem-bound kernel; keep 1e-5 tolerance on v5e).
    ot_ref[...] = (e / denom).astype(ot_ref.dtype)


def fold_params(w1, b1, w2, b2):
    """Fold fc1 and fc2 (no activation between them in the reference)."""
    w = jnp.dot(w1, w2, preferred_element_type=jnp.float32)        # (12, 5)
    b = jnp.dot(b1, w2, preferred_element_type=jnp.float32) + b2   # (1, 5)
    return w, b


def _pick_batch_tile(batch, block_b):
    """Batch tile: full batch if tiny, else >=2 grid steps of full vregs."""
    if batch <= 128:
        return batch                         # single full-extent block
    half = -(-batch // 2)                    # cdiv(batch, 2): >= 2 steps (v7x 2 TCs)
    half = -(-half // 128) * 128             # round up to whole 128-lane vregs
    return max(128, min(block_b, half))


def forward_folded(x, w, b, *, block_b=32768):
    """x: (B, 12) f32, w: (12, 5), b: (1, 5). Returns (B, 5) softmax probs."""
    batch = x.shape[0]
    assert x.shape[1] == IN_FEATURES

    tb = _pick_batch_tile(batch, block_b)
    grid = (pl.cdiv(batch, tb),)

    # Layout plumbing: present lane-dense slabs to the kernel.
    x_t = x.T            # (12, B)
    w_t = w.T            # (5, 12)
    b_t = b.T            # (5, 1)

    cost = pl.CostEstimate(
        flops=2 * batch * IN_FEATURES * OUT_FEATURES,
        transcendentals=OUT_FEATURES * batch,
        bytes_accessed=4 * batch * (IN_FEATURES + OUT_FEATURES)
        + 4 * (IN_FEATURES * OUT_FEATURES + OUT_FEATURES),
    )

    out_t = pl.pallas_call(
        _linear_softmax_kernel,
        out_shape=jax.ShapeDtypeStruct((OUT_FEATURES, batch), jnp.float32),
        grid=grid,
        in_specs=[
            # Streaming input: last dim (batch tile) is lane-dense.
            pl.BlockSpec((IN_FEATURES, tb), lambda i: (0, i)),
            # Tiny weight/bias: constant index_map -> VMEM-resident.
            pl.BlockSpec((OUT_FEATURES, IN_FEATURES), lambda i: (0, 0)),
            pl.BlockSpec((OUT_FEATURES, 1), lambda i: (0, 0)),
        ],
        out_specs=pl.BlockSpec((OUT_FEATURES, tb), lambda i: (0, i)),
        compiler_params=pltpu.CompilerParams(
            dimension_semantics=("parallel",),        # batch axis -> both v7x TCs
            vmem_limit_bytes=32 * 1024 * 1024,        # explicit; safe on v5e/v6e/v7x
        ),
        cost_estimate=cost,
    )(x_t, w_t, b_t)

    return out_t.T       # (B, 5)


def fivethirtyeight_main_task_forward(x, w1, b1, w2, b2, *, block_b=32768):
    """Convenience entry point matching the PyTorch module's parameters."""
    w, b = fold_params(w1, b1, w2, b2)
    return forward_folded(x, w, b, block_b=block_b)


def init_params(key):
    """Deterministic init mimicking nn.Linear (uniform +/- 1/sqrt(fan_in))."""
    k1, k2, k3, k4 = jax.random.split(key, 4)
    lim1 = 1.0 / jnp.sqrt(float(IN_FEATURES))
    lim2 = 1.0 / jnp.sqrt(float(HIDDEN))
    # Stored as (in, out) so the math is x @ W (PyTorch stores (out, in)).
    w1 = jax.random.uniform(k1, (IN_FEATURES, HIDDEN), jnp.float32, -lim1, lim1)
    b1 = jax.random.uniform(k2, (1, HIDDEN), jnp.float32, -lim1, lim1)
    w2 = jax.random.uniform(k3, (HIDDEN, OUT_FEATURES), jnp.float32, -lim2, lim2)
    b2 = jax.random.uniform(k4, (1, OUT_FEATURES), jnp.float32, -lim2, lim2)
    return w1, b1, w2, b2


def reference_forward(x, w1, b1, w2, b2):
    h = x @ w1 + b1
    z = h @ w2 + b2
    return jax.nn.softmax(z, axis=1)


if __name__ == "__main__":
    key = jax.random.PRNGKey(0)
    kx, kp, kx2, kx3 = jax.random.split(key, 4)
    w1, b1, w2, b2 = init_params(kp)

    # Hoisted folding + jit: weights folded once, reused across calls.
    w, b = fold_params(w1, b1, w2, b2)
    fwd = jax.jit(functools.partial(forward_folded, w=w, b=b))

    # 1) Small batch: single full-extent block (grid=(1,)).
    batch = 4
    x = jax.random.normal(kx, (batch, IN_FEATURES), jnp.float32)
    out = fivethirtyeight_main_task_forward(x, w1, b1, w2, b2)
    out = jax.block_until_ready(out)
    ref = reference_forward(x, w1, b1, w2, b2)
    assert out.shape == (batch, OUT_FEATURES)
    assert jnp.allclose(out, ref, atol=1e-5, rtol=1e-5)
    assert jnp.allclose(jnp.sum(out, axis=1), 1.0, atol=1e-5)

    # 2) Mid batch: auto tile -> tb=128, grid=(2,) (v7x gets both cores busy).
    batch2 = 256
    x2 = jax.random.normal(kx2, (batch2, IN_FEATURES), jnp.float32)
    out2 = jax.block_until_ready(fwd(x2))
    ref2 = reference_forward(x2, w1, b1, w2, b2)
    assert out2.shape == (batch2, OUT_FEATURES)
    assert jnp.allclose(out2, ref2, atol=1e-5, rtol=1e-5)

    # 3) Larger batch with an explicit cap: tb=128, grid=(3,), streaming path.
    batch3 = 384
    x3 = jax.random.normal(kx3, (batch3, IN_FEATURES), jnp.float32)
    out3 = forward_folded(x3, w, b, block_b=128)
    out3 = jax.block_until_ready(out3)
    ref3 = reference_forward(x3, w1, b1, w2, b2)
    assert out3.shape == (batch3, OUT_FEATURES)
    assert jnp.allclose(out3, ref3, atol=1e-5, rtol=1e-5)

    print("KERNEL_OK")
</pallas_src>

<mosaic_0001>
module attributes {stable_mosaic.version = 11 : i64} {
  func.func @_linear_softmax_kernel(%arg0: i32, %arg1: memref<12x4xf32, #tpu.memory_space<vmem>>, %arg2: memref<5x12xf32, #tpu.memory_space<vmem>>, %arg3: memref<5x1xf32, #tpu.memory_space<vmem>>, %arg4: memref<5x4xf32, #tpu.memory_space<vmem>>) attributes {dimension_semantics = [#tpu.dimension_semantics<parallel>], iteration_bounds = array<i64: 1>, scalar_prefetch = 0 : i64, scratch_operands = 0 : i64, tpu.core_type = #tpu.core_type<tc>, window_params = [{transform_indices = @transform_0, window_bounds = array<i64: 12, 4>}, {pipeline_mode = #tpu.pipeline_mode<synchronous>, transform_indices = @transform_1, window_bounds = array<i64: 5, 12>}, {pipeline_mode = #tpu.pipeline_mode<synchronous>, transform_indices = @transform_2, window_bounds = array<i64: 5, 1>}, {transform_indices = @transform_3, window_bounds = array<i64: 5, 4>}]} {
    %c0 = arith.constant 0 : index
    %c0_0 = arith.constant 0 : index
    %0 = vector.load %arg1[%c0, %c0_0] : memref<12x4xf32, #tpu.memory_space<vmem>>, vector<12x4xf32>
    %c0_1 = arith.constant 0 : index
    %c0_2 = arith.constant 0 : index
    %1 = vector.load %arg2[%c0_1, %c0_2] : memref<5x12xf32, #tpu.memory_space<vmem>>, vector<5x12xf32>
    %cst = arith.constant dense<0.000000e+00> : vector<5x4xf32>
    %2 = tpu.matmul %1, %0, %cst {dimension_numbers = #tpu.dot_dimension_numbers<[1], [0], [0], [1], [0, 0, 1, 1], [], []>} : vector<5x12xf32>, vector<12x4xf32>, vector<5x4xf32> -> vector<5x4xf32>
    %c0_3 = arith.constant 0 : index
    %c0_4 = arith.constant 0 : index
    %3 = vector.load %arg3[%c0_3, %c0_4] : memref<5x1xf32, #tpu.memory_space<vmem>>, vector<5x1xf32>
    %4 = vector.broadcast %3 : vector<5x1xf32> to vector<5x4xf32>
    %5 = arith.addf %2, %4 : vector<5x4xf32>
    %cst_5 = arith.constant dense<0xFF800000> : vector<4xf32>
    %6 = vector.multi_reduction <maximumf>, %5, %cst_5 [0] : vector<5x4xf32> to vector<4xf32>
    %7 = vector.shape_cast %6 : vector<4xf32> to vector<1x4xf32>
    %8 = vector.broadcast %7 : vector<1x4xf32> to vector<5x4xf32>
    %9 = arith.subf %5, %8 : vector<5x4xf32>
    %10 = math.exp %9 : vector<5x4xf32>
    %cst_6 = arith.constant dense<0.000000e+00> : vector<4xf32>
    %11 = vector.multi_reduction <add>, %10, %cst_6 [0] : vector<5x4xf32> to vector<4xf32>
    %12 = vector.shape_cast %11 : vector<4xf32> to vector<1x4xf32>
    %13 = vector.broadcast %12 : vector<1x4xf32> to vector<5x4xf32>
    %14 = arith.divf %10, %13 : vector<5x4xf32>
    %c0_7 = arith.constant 0 : index
    %c0_8 = arith.constant 0 : index
    %15 = vector.load %arg4[%c0_7, %c0_8] : memref<5x4xf32, #tpu.memory_space<vmem>>, vector<5x4xf32>
    tpu.vector_store %arg4[%c0_7, %c0_8], %14 {strides = array<i32>} : memref<5x4xf32, #tpu.memory_space<vmem>>, vector<5x4xf32>,
    return
  }
  func.func @transform_0(%arg0: i32) -> (i32, i32) {
    %c0_i32 = arith.constant 0 : i32
    %c0_i32_0 = arith.constant 0 : i32
    return %c0_i32, %arg0 : i32, i32
  }
  func.func @transform_1(%arg0: i32) -> (i32, i32) {
    %c0_i32 = arith.constant 0 : i32
    %c0_i32_0 = arith.constant 0 : i32
    %c0_i32_1 = arith.constant 0 : i32
    return %c0_i32, %c0_i32_0 : i32, i32
  }
  func.func @transform_2(%arg0: i32) -> (i32, i32) {
    %c0_i32 = arith.constant 0 : i32
    %c0_i32_0 = arith.constant 0 : i32
    %c0_i32_1 = arith.constant 0 : i32
    return %c0_i32, %c0_i32_0 : i32, i32
  }
  func.func @transform_3(%arg0: i32) -> (i32, i32) {
    %c0_i32 = arith.constant 0 : i32
    %c0_i32_0 = arith.constant 0 : i32
    return %c0_i32, %arg0 : i32, i32
  }
}

</mosaic_0001>

<llo_original>
// kernel: tpu_custom_call.1
$region0: #{tpu_custom_call.1}
  #allocation0 [shape = 'u32[]', space=smem, size = 0x4, offset = 0x4, fixed_abs, tag = 'smem constant byte address 0x4 - core index']
  #allocation1 [shape = 'u32[144,128]{1,0:T(1,128)}', space=vmem, size = 0x12000, scoped, tag = 'internal scratch']
  %s0 = inlined_call_operand.vmem [shape: f32[12,4], index: 0, kind: input, shape index: {}]
  %s1 = inlined_call_operand.vmem [shape: f32[5,12], index: 1, kind: input, shape index: {}]
  %s2 = inlined_call_operand.vmem [shape: f32[5,1], index: 2, kind: input, shape index: {}]
  %s3 = inlined_call_operand.vmem [shape: f32[5,4], index: 3, kind: output, shape index: {}]
  %s4 = sld [smem:[#allocation0]]
  $region22: #{tpu_custom_call.1} parent=0
    _
  %s6 = ssub.s32 1, %s4
  %s7 = scalar_select 0, %s6, %s4
  // Predicated region
  $region2: #{tpu_custom_call.1} parent=0 // pred_check
    _
  $region3: #{tpu_custom_call.1} parent=0 // pred_check_branch
    %9 = sbr.rel (0) target = $region5
  $region4: #{tpu_custom_call.1} parent=0 // pred_region
    _
  $region5: #{tpu_custom_call.1} parent=0 // pred_fallthru
    _
  // Predicated region
  $region6: #{tpu_custom_call.1} parent=0 // pred_check
    _
  $region7: #{tpu_custom_call.1} parent=0 // pred_check_branch
    %11 = sbr.rel (0) target = $region9
  $region8: #{tpu_custom_call.1} parent=0 // pred_region
    _
  $region9: #{tpu_custom_call.1} parent=0 // pred_fallthru
    _
  // Predicated region
  $region10: #{tpu_custom_call.1} parent=0 // pred_check
    _
  $region11: #{tpu_custom_call.1} parent=0 // pred_check_branch
    %13 = sbr.rel (0) target = $region13
  $region12: #{tpu_custom_call.1} parent=0 // pred_region
    _
  $region13: #{tpu_custom_call.1} parent=0 // pred_fallthru
    _
  %v14 = vld [vmem:[%s0] sm:$0xff]
  %v15 = vld [vmem:[%s0 + $0x8] sm:$0xf]
  %v16 = vld [vmem:[%s1] sm:$0x1f]
  %v17 = vld [vmem:[%s2] sm:$0x1f]
  %19 = vset.pattern.permute.xlu0 0
  %20 = vperm.xlu0 %19, %v17
  %v21 = vpop.permute.xlu0 %20
  %vm23 = vcmask 97280
  %v25 = vsel %vm23, %v16, 0
  %vm27 = vcmask 1043456
  %v29 = vsel %vm27, %v15, 0
  %31 = vmatprep.subr.mxu0 0.0
  %32 = vmatpush1.msra.mxu0 %v14
  %33 = vmatprep.subr.mxu0 0.0
  %34 = vmatpush1.msra.mxu0 %v29
  %35 = vmatprep.subr.mxu0 0.0
  %36 = vmatpush1.msra.mxu0 0.0
  %37 = vmatprep.subr.mxu0 0.0
  %38 = vmatpush1.msra.mxu0 0.0
  %39 = vmatprep.subr.mxu0 0.0
  %40 = vmatpush1.msra.mxu0 0.0
  %41 = vmatprep.subr.mxu0 0.0
  %42 = vmatpush1.msra.mxu0 0.0
  %43 = vmatprep.subr.mxu0 0.0
  %44 = vmatpush1.msra.mxu0 0.0
  %45 = vmatprep.subr.mxu0 0.0
  %46 = vmatpush1.msra.mxu0 0.0
  %47 = vmatprep.subr.mxu0 0.0
  %48 = vmatpush1.msra.mxu0 0.0
  %49 = vmatprep.subr.mxu0 0.0
  %50 = vmatpush1.msra.mxu0 0.0
  %51 = vmatprep.subr.mxu0 0.0
  %52 = vmatpush1.msra.mxu0 0.0
  %53 = vmatprep.subr.mxu0 0.0
  %54 = vmatpush1.msra.mxu0 0.0
  %55 = vmatprep.subr.mxu0 0.0
  %56 = vmatpush1.msra.mxu0 0.0
  %57 = vmatprep.subr.mxu0 0.0
  %58 = vmatpush1.msra.mxu0 0.0
  %59 = vmatprep.subr.mxu0 0.0
  %60 = vmatpush1.msra.mxu0 0.0
  %61 = vmatprep.subr.mxu0 0.0
  %62 = vmatpush1.msra.mxu0 0.0
  %63 = vmatprep.subr.mxu0 0.0
  %64 = vmatpush1.msra.mxu0 0.0
  %65 = vmatprep.subr.mxu0 0.0
  %66 = vmatpush1.msra.mxu0 0.0
  %67 = vmatprep.subr.mxu0 0.0
  %68 = vmatpush1.msra.mxu0 0.0
  %69 = vmatprep.subr.mxu0 0.0
  %70 = vmatpush1.msra.mxu0 0.0
  %71 = vmatprep.subr.mxu0 0.0
  %72 = vmatpush1.msra.mxu0 0.0
  %73 = vmatprep.subr.mxu0 0.0
  %74 = vmatpush1.msra.mxu0 0.0
  %75 = vmatprep.subr.mxu0 0.0
  %76 = vmatpush1.msra.mxu0 0.0
  %77 = vmatprep.subr.mxu0 0.0
  %78 = vmatpush1.msra.mxu0 0.0
  %79 = vmatprep.subr.mxu0 0.0
  %80 = vmatpush1.msra.mxu0 0.0
  %81 = vmatprep.subr.mxu0 0.0
  %82 = vmatpush1.msra.mxu0 0.0
  %83 = vmatprep.subr.mxu0 0.0
  %84 = vmatpush1.msra.mxu0 0.0
  %85 = vmatprep.subr.mxu0 0.0
  %86 = vmatpush1.msra.mxu0 0.0
  %87 = vmatprep.subr.mxu0 0.0
  %88 = vmatpush1.msra.mxu0 0.0
  %89 = vmatprep.subr.mxu0 0.0
  %90 = vmatpush1.msra.mxu0 0.0
  %91 = vmatprep.subr.mxu0 0.0
  %92 = vmatpush1.msra.mxu0 0.0
  %93 = vmatprep.subr.mxu0 0.0
  %94 = vmatpush1.msra.mxu0 0.0
  %95 = vmatprep.mubr.f32.mxu0 0.0
  %96 = vmatmul.mubr.f32.gmra.mrb[0].mxu0 %v25
  %v97 = vpop.f32.mrb[0].mxu0
  %v98 = vadd.f32 %v21, %v97
  %v99 = vpop.f32.mrb[0].mxu0
  %100 = vdwg.mxu0
  %vm101 = vcmask 28672
  %v102 = vsel %vm101, %v98, -inf
  %v103 = vrot.slane %v102, 4
  %v104 = vmax.f32 %v102, %v103
  %v105 = vrot.slane %v104, 2
  %v106 = vmax.f32 %v104, %v105
  %v107 = vrot.slane %v106, 1
  %v108 = vmax.f32 %v106, %v107
  %v109 = vsub.f32 %v98, %v108
  %v110 = vmul.f32 %v109, 1.442695
  %v111 = vpow.pop %v110
  %v112 = vsel %vm101, %v111, 0.0
  %v113 = vrot.slane %v112, 4
  %v114 = vadd.f32 %v112, %v113
  %v115 = vrot.slane %v114, 2
  %v116 = vadd.f32 %v114, %v115
  %v117 = vrot.slane %v116, 1
  %v118 = vadd.f32 %v116, %v117
  %v119 = vrcp.pop %v118
  %v120 = vmul.f32 %v111, %v119
  %121 = vst.msk [vmem:[%s3] sm:$0x1f] %vm101, %v120
  // Predicated region
  $region14: #{tpu_custom_call.1} parent=0 // pred_check
    _
  $region15: #{tpu_custom_call.1} parent=0 // pred_check_branch
    %123 = sbr.rel (0) target = $region17
  $region16: #{tpu_custom_call.1} parent=0 // pred_region
    _
  $region17: #{tpu_custom_call.1} parent=0 // pred_fallthru
    _
  // Predicated region
  $region18: #{tpu_custom_call.1} parent=0 // pred_check
    _
  $region19: #{tpu_custom_call.1} parent=0 // pred_check_branch
    %125 = sbr.rel (0) target = $region21
  $region20: #{tpu_custom_call.1} parent=0 // pred_region
    _
  $region21: #{tpu_custom_call.1} parent=0 // pred_fallthru
    _

</llo_original>
